<compile_context>
chip_gen: v7x
topology: tpu7x:2x2x1
jax: 0.10.0
libtpu: 0.0.40
codegen_flags: <defaults>
</compile_context>

<pallas_src>
import jax
import jax.numpy as jnp
from jax import lax
from jax.experimental import pallas as pl
from jax.experimental.pallas import tpu as pltpu


def _round_up(x, m):
    return ((x + m - 1) // m) * m


def _generator_kernel(z_ref, lab_ref, w1_ref, tbl_ref, b1_ref, w2_ref, b2_ref,
                      out_ref):
    # z_ref:   [TB, LD]       f32   latent inputs (batch tile)
    # lab_ref: [TB, 1]        i32   class labels  (batch tile)
    # w1_ref:  [LD, H]        bf16  first-layer weights, latent part (resident)
    # tbl_ref: [NCP, H]       bf16  per-class table = emb @ W1[latent:, :] (padded)
    # b1_ref:  [1, H]         f32
    # w2_ref:  [H, OUT_PAD]   bf16  second-layer weights, zero-padded columns
    # b2_ref:  [1, OUT_PAD]   f32
    # out_ref: [TB, OUT_PAD]  f32   lane-dense output slab
    tb = z_ref.shape[0]
    ncp = tbl_ref.shape[0]

    z_bf = z_ref[...].astype(jnp.bfloat16)

    # Embedding lookup + concat, folded: one_hot(labels) @ table  (tiny MXU op).
    classes = lax.broadcasted_iota(jnp.int32, (tb, ncp), 1)
    one_hot = (lab_ref[...] == classes).astype(jnp.bfloat16)          # [TB, NCP]

    h = jnp.dot(z_bf, w1_ref[...], preferred_element_type=jnp.float32)
    h = h + jnp.dot(one_hot, tbl_ref[...], preferred_element_type=jnp.float32)
    h = jnp.maximum(h + b1_ref[...], 0.0)                              # f32 bias + ReLU

    y = jnp.dot(h.astype(jnp.bfloat16), w2_ref[...],
                preferred_element_type=jnp.float32) + b2_ref[...]
    out_ref[...] = y.astype(out_ref.dtype)


def generator_forward(z, labels, params, *, block_b=256):
    """z: [B, latent_dim] f32, labels: [B] int -> [B, input_dim] f32."""
    B, latent_dim = z.shape
    emb = params["label_emb"]                       # [num_classes, num_classes]
    w1 = params["w1"]                               # [latent_dim + num_classes, H]
    b1 = params["b1"].reshape(1, -1).astype(jnp.float32)
    w2 = params["w2"]                               # [H, out_dim]
    b2 = params["b2"].reshape(1, -1)
    num_classes = emb.shape[0]
    H = w1.shape[1]
    out_dim = w2.shape[1]

    # ---- one-time weight prep (constant-folds under jit with frozen params) ----
    w1_z = w1[:latent_dim, :].astype(jnp.bfloat16)                      # [LD, H]
    tbl = jnp.dot(emb, w1[latent_dim:, :],
                  preferred_element_type=jnp.float32)                   # [NC, H]
    NCP = _round_up(num_classes, 8)
    tbl = jnp.pad(tbl, ((0, NCP - num_classes), (0, 0))).astype(jnp.bfloat16)

    OUT_PAD = _round_up(out_dim, 128)                                    # lane-dense out
    w2_p = jnp.pad(w2, ((0, 0), (0, OUT_PAD - out_dim))).astype(jnp.bfloat16)
    b2_p = jnp.pad(b2, ((0, 0), (0, OUT_PAD - out_dim))).astype(jnp.float32)

    # ---- batch tiling ----
    TB = min(block_b, _round_up(B, 8))
    Bp = _round_up(B, TB)
    z_p = z.astype(jnp.float32)
    lab_p = labels.astype(jnp.int32).reshape(-1, 1)
    if Bp != B:
        z_p = jnp.pad(z_p, ((0, Bp - B), (0, 0)))
        lab_p = jnp.pad(lab_p, ((0, Bp - B), (0, 0)))

    out = pl.pallas_call(
        _generator_kernel,
        out_shape=jax.ShapeDtypeStruct((Bp, OUT_PAD), jnp.float32),
        grid=(Bp // TB,),
        in_specs=[
            pl.BlockSpec((TB, latent_dim), lambda i: (i, 0)),   # z     (batch tile)
            pl.BlockSpec((TB, 1), lambda i: (i, 0)),            # labels (batch tile)
            pl.BlockSpec((latent_dim, H), lambda i: (0, 0)),    # W1 latent part (resident)
            pl.BlockSpec((NCP, H), lambda i: (0, 0)),           # class table    (resident)
            pl.BlockSpec((1, H), lambda i: (0, 0)),             # b1
            pl.BlockSpec((H, OUT_PAD), lambda i: (0, 0)),       # W2             (resident)
            pl.BlockSpec((1, OUT_PAD), lambda i: (0, 0)),       # b2
        ],
        out_specs=pl.BlockSpec((TB, OUT_PAD), lambda i: (i, 0)),
        compiler_params=pltpu.CompilerParams(
            dimension_semantics=("parallel",),      # shard batch tiles across TCs (v7x)
            vmem_limit_bytes=32 * 1024 * 1024,      # conservative for v7x's 64 MiB VMEM
        ),
    )(z_p, lab_p, w1_z, tbl, b1, w2_p, b2_p)

    return out[:B, :out_dim]


def init_params(key, input_dim, latent_dim, num_classes, hidden=128):
    """Deterministic synthetic parameter init matching the module's shapes."""
    k1, k2, k3, k4, k5 = jax.random.split(key, 5)
    in_dim = latent_dim + num_classes
    return {
        # nn.Embedding(num_classes, num_classes)
        "label_emb": jax.random.normal(k1, (num_classes, num_classes), jnp.float32),
        # nn.Linear(latent_dim + num_classes, 128): stored as [in, out]
        "w1": jax.random.normal(k2, (in_dim, hidden), jnp.float32) * 0.05,
        "b1": jax.random.normal(k3, (1, hidden), jnp.float32) * 0.01,
        # nn.Linear(128, input_dim): stored as [in, out]
        "w2": jax.random.normal(k4, (hidden, input_dim), jnp.float32) * 0.05,
        "b2": jax.random.normal(k5, (1, input_dim), jnp.float32) * 0.01,
    }


if __name__ == "__main__":
    # Small shapes consistent with the module: NSL-KDD-ish feature dim,
    # 5 attack classes, modest latent size.
    batch = 8
    input_dim = 41
    latent_dim = 32
    num_classes = 5
    hidden = 128

    key = jax.random.PRNGKey(0)
    kp, kz, kl = jax.random.split(key, 3)

    params = init_params(kp, input_dim, latent_dim, num_classes, hidden)
    z = jax.random.normal(kz, (batch, latent_dim), jnp.float32)
    labels = jax.random.randint(kl, (batch,), 0, num_classes, dtype=jnp.int32)

    out = generator_forward(z, labels, params)
    out = jax.block_until_ready(out)
    assert out.shape == (batch, input_dim)

    # Reference 1: mirror the kernel's bf16 decomposition exactly (f32 accumulation)
    # so the comparison is apples-to-apples with the quantized weights.
    w1_z = params["w1"][:latent_dim, :].astype(jnp.bfloat16)
    tbl = jnp.dot(params["label_emb"], params["w1"][latent_dim:, :],
                  preferred_element_type=jnp.float32).astype(jnp.bfloat16)
    h_ref = (jnp.dot(z.astype(jnp.bfloat16), w1_z, preferred_element_type=jnp.float32)
             + jnp.take(tbl, labels, axis=0).astype(jnp.float32)
             + params["b1"])
    h_ref = jnp.maximum(h_ref, 0.0)
    ref_q = (jnp.dot(h_ref.astype(jnp.bfloat16), params["w2"].astype(jnp.bfloat16),
                     preferred_element_type=jnp.float32) + params["b2"])
    assert jnp.allclose(out, ref_q, atol=1e-3, rtol=1e-3)

    # Reference 2: full-f32 PyTorch-equivalent forward (loose check; bf16 weights).
    c = jnp.take(params["label_emb"], labels, axis=0)
    x = jnp.concatenate([z, c], axis=1)
    ref_f32 = jnp.maximum(x @ params["w1"] + params["b1"], 0.0) @ params["w2"] + params["b2"]
    assert float(jnp.max(jnp.abs(out - ref_f32))) < 5e-2

    print("KERNEL_OK")
</pallas_src>

<mosaic_0001>
module attributes {stable_mosaic.version = 11 : i64} {
  func.func @_generator_kernel(%arg0: i32, %arg1: memref<8x32xf32, #tpu.memory_space<vmem>>, %arg2: memref<8x1xi32, #tpu.memory_space<vmem>>, %arg3: memref<32x128xbf16, #tpu.memory_space<vmem>>, %arg4: memref<8x128xbf16, #tpu.memory_space<vmem>>, %arg5: memref<1x128xf32, #tpu.memory_space<vmem>>, %arg6: memref<128x128xbf16, #tpu.memory_space<vmem>>, %arg7: memref<1x128xf32, #tpu.memory_space<vmem>>, %arg8: memref<8x128xf32, #tpu.memory_space<vmem>>) attributes {dimension_semantics = [#tpu.dimension_semantics<parallel>], iteration_bounds = array<i64: 1>, scalar_prefetch = 0 : i64, scratch_operands = 0 : i64, tpu.core_type = #tpu.core_type<tc>, window_params = [{transform_indices = @transform_0, window_bounds = array<i64: 8, 32>}, {transform_indices = @transform_1, window_bounds = array<i64: 8, 1>}, {pipeline_mode = #tpu.pipeline_mode<synchronous>, transform_indices = @transform_2, window_bounds = array<i64: 32, 128>}, {pipeline_mode = #tpu.pipeline_mode<synchronous>, transform_indices = @transform_3, window_bounds = array<i64: 8, 128>}, {pipeline_mode = #tpu.pipeline_mode<synchronous>, transform_indices = @transform_4, window_bounds = array<i64: 1, 128>}, {pipeline_mode = #tpu.pipeline_mode<synchronous>, transform_indices = @transform_5, window_bounds = array<i64: 128, 128>}, {pipeline_mode = #tpu.pipeline_mode<synchronous>, transform_indices = @transform_6, window_bounds = array<i64: 1, 128>}, {transform_indices = @transform_7, window_bounds = array<i64: 8, 128>}]} {
    %c0 = arith.constant 0 : index
    %c0_0 = arith.constant 0 : index
    %0 = vector.load %arg1[%c0, %c0_0] : memref<8x32xf32, #tpu.memory_space<vmem>>, vector<8x32xf32>
    %1 = arith.truncf %0 : vector<8x32xf32> to vector<8x32xbf16>
    %2 = tpu.iota {dimensions = array<i32: 1>} : vector<8x8xi32>
    %c0_1 = arith.constant 0 : index
    %c0_2 = arith.constant 0 : index
    %3 = vector.load %arg2[%c0_1, %c0_2] : memref<8x1xi32, #tpu.memory_space<vmem>>, vector<8x1xi32>
    %4 = vector.broadcast %3 : vector<8x1xi32> to vector<8x8xi32>
    %5 = arith.cmpi eq, %4, %2 : vector<8x8xi32>
    %6 = arith.extui %5 : vector<8x8xi1> to vector<8x8xi32>
    %7 = arith.sitofp %6 : vector<8x8xi32> to vector<8x8xf32>
    %8 = arith.truncf %7 : vector<8x8xf32> to vector<8x8xbf16>
    %c0_3 = arith.constant 0 : index
    %c0_4 = arith.constant 0 : index
    %9 = vector.load %arg3[%c0_3, %c0_4] : memref<32x128xbf16, #tpu.memory_space<vmem>>, vector<32x128xbf16>
    %cst = arith.constant dense<0.000000e+00> : vector<8x128xf32>
    %10 = tpu.matmul %1, %9, %cst {dimension_numbers = #tpu.dot_dimension_numbers<[1], [0], [0], [1], [0, 0, 1, 1], [], []>} : vector<8x32xbf16>, vector<32x128xbf16>, vector<8x128xf32> -> vector<8x128xf32>
    %c0_5 = arith.constant 0 : index
    %c0_6 = arith.constant 0 : index
    %11 = vector.load %arg4[%c0_5, %c0_6] : memref<8x128xbf16, #tpu.memory_space<vmem>>, vector<8x128xbf16>
    %cst_7 = arith.constant dense<0.000000e+00> : vector<8x128xf32>
    %12 = tpu.matmul %8, %11, %cst_7 {dimension_numbers = #tpu.dot_dimension_numbers<[1], [0], [0], [1], [0, 0, 1, 1], [], []>} : vector<8x8xbf16>, vector<8x128xbf16>, vector<8x128xf32> -> vector<8x128xf32>
    %13 = arith.addf %10, %12 : vector<8x128xf32>
    %c0_8 = arith.constant 0 : index
    %c0_9 = arith.constant 0 : index
    %14 = vector.load %arg5[%c0_8, %c0_9] : memref<1x128xf32, #tpu.memory_space<vmem>>, vector<1x128xf32>
    %15 = vector.broadcast %14 : vector<1x128xf32> to vector<8x128xf32>
    %16 = arith.addf %13, %15 : vector<8x128xf32>
    %cst_10 = arith.constant 0.000000e+00 : f32
    %17 = vector.broadcast %cst_10 : f32 to vector<8x128xf32>
    %18 = arith.maximumf %16, %17 : vector<8x128xf32>
    %19 = arith.truncf %18 : vector<8x128xf32> to vector<8x128xbf16>
    %c0_11 = arith.constant 0 : index
    %c0_12 = arith.constant 0 : index
    %20 = vector.load %arg6[%c0_11, %c0_12] : memref<128x128xbf16, #tpu.memory_space<vmem>>, vector<128x128xbf16>
    %cst_13 = arith.constant dense<0.000000e+00> : vector<8x128xf32>
    %21 = tpu.matmul %19, %20, %cst_13 {dimension_numbers = #tpu.dot_dimension_numbers<[1], [0], [0], [1], [0, 0, 1, 1], [], []>} : vector<8x128xbf16>, vector<128x128xbf16>, vector<8x128xf32> -> vector<8x128xf32>
    %c0_14 = arith.constant 0 : index
    %c0_15 = arith.constant 0 : index
    %22 = vector.load %arg7[%c0_14, %c0_15] : memref<1x128xf32, #tpu.memory_space<vmem>>, vector<1x128xf32>
    %23 = vector.broadcast %22 : vector<1x128xf32> to vector<8x128xf32>
    %24 = arith.addf %21, %23 : vector<8x128xf32>
    %c0_16 = arith.constant 0 : index
    %c0_17 = arith.constant 0 : index
    %25 = vector.load %arg8[%c0_16, %c0_17] : memref<8x128xf32, #tpu.memory_space<vmem>>, vector<8x128xf32>
    tpu.vector_store %arg8[%c0_16, %c0_17], %24 {strides = array<i32>} : memref<8x128xf32, #tpu.memory_space<vmem>>, vector<8x128xf32>,
    return
  }
  func.func @transform_0(%arg0: i32) -> (i32, i32) {
    %c0_i32 = arith.constant 0 : i32
    %c0_i32_0 = arith.constant 0 : i32
    return %arg0, %c0_i32 : i32, i32
  }
  func.func @transform_1(%arg0: i32) -> (i32, i32) {
    %c0_i32 = arith.constant 0 : i32
    %c0_i32_0 = arith.constant 0 : i32
    return %arg0, %c0_i32 : i32, i32
  }
  func.func @transform_2(%arg0: i32) -> (i32, i32) {
    %c0_i32 = arith.constant 0 : i32
    %c0_i32_0 = arith.constant 0 : i32
    %c0_i32_1 = arith.constant 0 : i32
    return %c0_i32, %c0_i32_0 : i32, i32
  }
  func.func @transform_3(%arg0: i32) -> (i32, i32) {
    %c0_i32 = arith.constant 0 : i32
    %c0_i32_0 = arith.constant 0 : i32
    %c0_i32_1 = arith.constant 0 : i32
    return %c0_i32, %c0_i32_0 : i32, i32
  }
  func.func @transform_4(%arg0: i32) -> (i32, i32) {
    %c0_i32 = arith.constant 0 : i32
    %c0_i32_0 = arith.constant 0 : i32
    %c0_i32_1 = arith.constant 0 : i32
    return %c0_i32, %c0_i32_0 : i32, i32
  }
  func.func @transform_5(%arg0: i32) -> (i32, i32) {
    %c0_i32 = arith.constant 0 : i32
    %c0_i32_0 = arith.constant 0 : i32
    %c0_i32_1 = arith.constant 0 : i32
    return %c0_i32, %c0_i32_0 : i32, i32
  }
  func.func @transform_6(%arg0: i32) -> (i32, i32) {
    %c0_i32 = arith.constant 0 : i32
    %c0_i32_0 = arith.constant 0 : i32
    %c0_i32_1 = arith.constant 0 : i32
    return %c0_i32, %c0_i32_0 : i32, i32
  }
  func.func @transform_7(%arg0: i32) -> (i32, i32) {
    %c0_i32 = arith.constant 0 : i32
    %c0_i32_0 = arith.constant 0 : i32
    return %arg0, %c0_i32 : i32, i32
  }
}

</mosaic_0001>

<llo_original>
// kernel: tpu_custom_call.1
$region0: #{tpu_custom_call.1}
  #allocation0 [shape = 'u32[]', space=smem, size = 0x4, offset = 0x4, fixed_abs, tag = 'smem constant byte address 0x4 - core index']
  #allocation1 [shape = 'u32[144,128]{1,0:T(1,128)}', space=vmem, size = 0x12000, scoped, tag = 'internal scratch']
  %s0 = inlined_call_operand.hbm [shape: f32[8,32], index: 0, kind: input, shape index: {}]
  %s1 = inlined_call_operand.vmem [shape: s32[8,1], index: 1, kind: input, shape index: {}]
  %s2 = inlined_call_operand.vmem [shape: bf16[32,128], index: 2, kind: input, shape index: {}]
  %s3 = inlined_call_operand.vmem [shape: bf16[8,128], index: 3, kind: input, shape index: {}]
  %s4 = inlined_call_operand.vmem [shape: f32[1,128], index: 4, kind: input, shape index: {}]
  %s5 = inlined_call_operand.hbm [shape: bf16[128,128], index: 5, kind: input, shape index: {}]
  %s6 = inlined_call_operand.vmem [shape: f32[1,128], index: 6, kind: input, shape index: {}]
  %s7 = inlined_call_operand.hbm [shape: f32[8,128], index: 7, kind: output, shape index: {}]
  %s8 = sld [smem:[#allocation0]]
  $region46: #{tpu_custom_call.1} parent=0
    _
  %s10 = ssub.s32 1, %s8
  %s11 = scalar_select 0, %s10, %s8
  $region1: #{tpu_custom_call.1} parent=0
    #allocation2 [shape = 'u8[4096]{0}', space=vmem, size = 0x1000, scoped, tag = 'input window, operand 0, single buffered']
    #allocation3 [shape = 's32[1]{0}', space=sflag, size = 0x4, scoped, tag = 'scoped memory for tpu_custom_call.1']
    #allocation4 [shape = 's32[1]{0}', space=sflag, size = 0x4, scoped, tag = 'scoped memory for tpu_custom_call.1']
    #allocation5 [shape = 'u8[32768]{0}', space=vmem, size = 0x8000, scoped, tag = 'input window, operand 5, single buffered']
    #allocation6 [shape = 's32[1]{0}', space=sflag, size = 0x4, scoped, tag = 'scoped memory for tpu_custom_call.1']
    #allocation7 [shape = 'u8[4096]{0}', space=vmem, size = 0x1000, scoped, tag = 'output window, operand 0, single buffered']
    %12 = vsyncpa [#allocation3], 0
    %13 = vsyncpa [#allocation6], 0
    %14 = vsyncpa [#allocation4], 0
    // Predicated region
    $region2: #{tpu_custom_call.1} parent=1 // pred_check
      _
    $region3: #{tpu_custom_call.1} parent=1 // pred_check_branch
      %16 = sbr.rel (0) target = $region5
    $region4: #{tpu_custom_call.1} parent=1 // pred_region
      %s18 = ssub.s32 128, 128
      %19 = vsyncadd [#allocation3], %s18
      %s21 = sshll.u32 [#allocation2], 4
      %s22 = int_to_ptr.vmem [resolvable:$true] %s21
      %24 = dma.hbm_to_vmem [thread:$0]  %s0, 128, %s22, [#allocation3]
    $region5: #{tpu_custom_call.1} parent=1 // pred_fallthru
      _
    // Predicated region
    $region6: #{tpu_custom_call.1} parent=1 // pred_check
      _
    $region7: #{tpu_custom_call.1} parent=1 // pred_check_branch
      %26 = sbr.rel (0) target = $region9
    $region8: #{tpu_custom_call.1} parent=1 // pred_region
      _
    $region9: #{tpu_custom_call.1} parent=1 // pred_fallthru
      _
    // Predicated region
    $region10: #{tpu_custom_call.1} parent=1 // pred_check
      _
    $region11: #{tpu_custom_call.1} parent=1 // pred_check_branch
      %28 = sbr.rel (0) target = $region13
    $region12: #{tpu_custom_call.1} parent=1 // pred_region
      _
    $region13: #{tpu_custom_call.1} parent=1 // pred_fallthru
      _
    // Predicated region
    $region14: #{tpu_custom_call.1} parent=1 // pred_check
      _
    $region15: #{tpu_custom_call.1} parent=1 // pred_check_branch
      %30 = sbr.rel (0) target = $region17
    $region16: #{tpu_custom_call.1} parent=1 // pred_region
      _
    $region17: #{tpu_custom_call.1} parent=1 // pred_fallthru
      _
    // Predicated region
    $region18: #{tpu_custom_call.1} parent=1 // pred_check
      _
    $region19: #{tpu_custom_call.1} parent=1 // pred_check_branch
      %32 = sbr.rel (0) target = $region21
    $region20: #{tpu_custom_call.1} parent=1 // pred_region
      _
    $region21: #{tpu_custom_call.1} parent=1 // pred_fallthru
      _
    // Predicated region
    $region22: #{tpu_custom_call.1} parent=1 // pred_check
      _
    $region23: #{tpu_custom_call.1} parent=1 // pred_check_branch
      %34 = sbr.rel (0) target = $region25
    $region24: #{tpu_custom_call.1} parent=1 // pred_region
      %s36 = ssub.s32 1024, 1024
      %37 = vsyncadd [#allocation6], %s36
      %s38 = sshll.u32 [#allocation5], 4
      %s39 = int_to_ptr.vmem [resolvable:$true] %s38
      %44 = dma.hbm_to_vmem [thread:$0]  %s5, 1024, %s39, [#allocation6], 64, 64, 4
    $region25: #{tpu_custom_call.1} parent=1 // pred_fallthru
      _
    // Predicated region
    $region26: #{tpu_custom_call.1} parent=1 // pred_check
      _
    $region27: #{tpu_custom_call.1} parent=1 // pred_check_branch
      %46 = sbr.rel (0) target = $region29
    $region28: #{tpu_custom_call.1} parent=1 // pred_region
      _
    $region29: #{tpu_custom_call.1} parent=1 // pred_fallthru
      _
    // Predicated region
    $region30: #{tpu_custom_call.1} parent=1 // pred_check
      _
    $region31: #{tpu_custom_call.1} parent=1 // pred_check_branch
      %48 = sbr.rel (0) target = $region33
    $region32: #{tpu_custom_call.1} parent=1 // pred_region
      %49 = dma.done [#allocation3], 128
    $region33: #{tpu_custom_call.1} parent=1 // pred_fallthru
      _
    // Predicated region
    $region34: #{tpu_custom_call.1} parent=1 // pred_check
      _
    $region35: #{tpu_custom_call.1} parent=1 // pred_check_branch
      %51 = sbr.rel (0) target = $region37
    $region36: #{tpu_custom_call.1} parent=1 // pred_region
      %52 = dma.done [#allocation6], 1024
    $region37: #{tpu_custom_call.1} parent=1 // pred_fallthru
      _
    %v54 = vld [vmem:[#allocation2] sm:$0xff]
    %v55 = vpack.c.bf16 %v54, %v54
    %v56 = vlaneseq
    %v57 = vand.u32 %v56, 127
    %v58 = vld [vmem:[%s1] sm:$0xff]
    %59 = vset.pattern.permute.xlu0 0
    %60 = vperm.xlu0 %59, %v58
    %v61 = vpop.permute.xlu0 %60
    %vm62 = vcmp.eq.s32.totalorder %v61, %v57
    %v63 = vsel %vm62, 1, 0
    %v64 = vcvt.s32.f32 %v63
    %v65 = vpack.c.bf16 %v64, %v64
    %v66 = vld [vmem:[%s2] sm:$0xf]
    %v67 = vld [vmem:[%s2 + $0x4] sm:$0xf]
    %v68 = vld [vmem:[%s2 + $0x8] sm:$0xf]
    %v69 = vld [vmem:[%s2 + $0xc] sm:$0xf]
    %v70 = vld [vmem:[%s3] sm:$0xf]
    %vm71 = vcmask 64512
    %v73 = vsel %vm71, %v65, 0
    %vm75 = vcmask 1043456
    %v77 = vsel %vm75, %v70, 0
    %79 = vmatprep.subr.bf16.mxu0 0
    %80 = vmatpush1.bf16.msra.mxu0 %v77
    %81 = vmatprep.subr.bf16.mxu0 0
    %82 = vmatpush1.bf16.msra.mxu0 0
    %83 = vmatprep.subr.bf16.mxu0 0
    %84 = vmatpush1.bf16.msra.mxu0 0
    %85 = vmatprep.subr.bf16.mxu0 0
    %86 = vmatpush1.bf16.msra.mxu0 0
    %87 = vmatprep.subr.bf16.mxu0 0
    %88 = vmatpush1.bf16.msra.mxu0 0
    %89 = vmatprep.subr.bf16.mxu0 0
    %90 = vmatpush1.bf16.msra.mxu0 0
    %91 = vmatprep.subr.bf16.mxu0 0
    %92 = vmatpush1.bf16.msra.mxu0 0
    %93 = vmatprep.subr.bf16.mxu0 0
    %94 = vmatpush1.bf16.msra.mxu0 0
    %95 = vmatprep.subr.bf16.mxu0 0
    %96 = vmatpush1.bf16.msra.mxu0 0
    %97 = vmatprep.subr.bf16.mxu0 0
    %98 = vmatpush1.bf16.msra.mxu0 0
    %99 = vmatprep.subr.bf16.mxu0 0
    %100 = vmatpush1.bf16.msra.mxu0 0
    %101 = vmatprep.subr.bf16.mxu0 0
    %102 = vmatpush1.bf16.msra.mxu0 0
    %103 = vmatprep.subr.bf16.mxu0 0
    %104 = vmatpush1.bf16.msra.mxu0 0
    %105 = vmatprep.subr.bf16.mxu0 0
    %106 = vmatpush1.bf16.msra.mxu0 0
    %107 = vmatprep.subr.bf16.mxu0 0
    %108 = vmatpush1.bf16.msra.mxu0 0
    %109 = vmatprep.subr.bf16.mxu0 0
    %110 = vmatpush1.bf16.msra.mxu0 0
    %111 = vmatprep.mubr.bf16.mxu0 0
    %112 = vmatmul.mubr.bf16.gmra.mrb[0].mxu0 %v73
    %v113 = vpop.f32.mrb[0].mxu0
    %v114 = vadd.f32 0.0, %v113
    %v115 = vpop.f32.mrb[0].mxu0
    %v116 = vpop.f32.mrb[0].mxu0
    %v117 = vpop.f32.mrb[0].mxu0
    %118 = vdwg.mxu0
    %v123 = vunpack.c.l.b16 %v66
    %v124 = vunpack.c.l.b16 %v67
    %v125 = vunpack.c.l.b16 %v68
    %v126 = vunpack.c.l.b16 %v69
    %v127 = vpack.c.b16 %v124, %v123
    %v128 = vpack.c.b16 %v126, %v125
    %vm131 = vcmask 261120
    %v133 = vsel %vm131, %v55, 0
    %135 = vmatprep.subr.bf16.mxu0 0
    %136 = vmatpush1.bf16.msra.mxu0 %v127
    %137 = vmatprep.subr.bf16.mxu0 0
    %138 = vmatpush1.bf16.msra.mxu0 %v128
    %139 = vmatprep.subr.bf16.mxu0 0
    %140 = vmatpush1.bf16.msra.mxu0 0
    %141 = vmatprep.subr.bf16.mxu0 0
    %142 = vmatpush1.bf16.msra.mxu0 0
    %143 = vmatprep.subr.bf16.mxu0 0
    %144 = vmatpush1.bf16.msra.mxu0 0
    %145 = vmatprep.subr.bf16.mxu0 0
    %146 = vmatpush1.bf16.msra.mxu0 0
    %147 = vmatprep.subr.bf16.mxu0 0
    %148 = vmatpush1.bf16.msra.mxu0 0
    %149 = vmatprep.subr.bf16.mxu0 0
    %150 = vmatpush1.bf16.msra.mxu0 0
    %151 = vmatprep.subr.bf16.mxu0 0
    %152 = vmatpush1.bf16.msra.mxu0 0
    %153 = vmatprep.subr.bf16.mxu0 0
    %154 = vmatpush1.bf16.msra.mxu0 0
    %155 = vmatprep.subr.bf16.mxu0 0
    %156 = vmatpush1.bf16.msra.mxu0 0
    %157 = vmatprep.subr.bf16.mxu0 0
    %158 = vmatpush1.bf16.msra.mxu0 0
    %159 = vmatprep.subr.bf16.mxu0 0
    %160 = vmatpush1.bf16.msra.mxu0 0
    %161 = vmatprep.subr.bf16.mxu0 0
    %162 = vmatpush1.bf16.msra.mxu0 0
    %163 = vmatprep.subr.bf16.mxu0 0
    %164 = vmatpush1.bf16.msra.mxu0 0
    %165 = vmatprep.subr.bf16.mxu0 0
    %166 = vmatpush1.bf16.msra.mxu0 0
    %167 = vmatprep.mubr.bf16.mxu0 0
    %168 = vmatmul.mubr.bf16.gmra.mrb[0].mxu0 %v133
    %v169 = vpop.f32.mrb[0].mxu0
    %v170 = vadd.f32 %v114, %v169
    %v171 = vpop.f32.mrb[0].mxu0
    %v172 = vpop.f32.mrb[0].mxu0
    %v173 = vpop.f32.mrb[0].mxu0
    %174 = vdwg.mxu0
    %v175 = vld [vmem:[%s4] sm:$0x1]
    %v177 = vlaneseq
    %v178 = vshrl.u32 %v177, 7
    %v179 = vsub.s32 0, %v178
    %v180 = vrot.slane %v175, %v179
    %v182 = vadd.f32 %v170, %v180
    %v183 = vmax.f32 %v182, 0.0
    %v184 = vpack.c.bf16 %v183, %v183
    %v185 = vld [vmem:[#allocation5] sm:$0xf]
    %v186 = vld [vmem:[#allocation5 + $0x4] sm:$0xf]
    %v187 = vld [vmem:[#allocation5 + $0x8] sm:$0xf]
    %v188 = vld [vmem:[#allocation5 + $0xc] sm:$0xf]
    %v189 = vld [vmem:[#allocation5 + $0x10] sm:$0xf]
    %v190 = vld [vmem:[#allocation5 + $0x14] sm:$0xf]
    %v191 = vld [vmem:[#allocation5 + $0x18] sm:$0xf]
    %v192 = vld [vmem:[#allocation5 + $0x1c] sm:$0xf]
    %v193 = vld [vmem:[#allocation5 + $0x20] sm:$0xf]
    %v194 = vld [vmem:[#allocation5 + $0x24] sm:$0xf]
    %v195 = vld [vmem:[#allocation5 + $0x28] sm:$0xf]
    %v196 = vld [vmem:[#allocation5 + $0x2c] sm:$0xf]
    %v197 = vld [vmem:[#allocation5 + $0x30] sm:$0xf]
    %v198 = vld [vmem:[#allocation5 + $0x34] sm:$0xf]
    %v199 = vld [vmem:[#allocation5 + $0x38] sm:$0xf]
    %v200 = vld [vmem:[#allocation5 + $0x3c] sm:$0xf]
    %v201 = vld [vmem:[%s6] sm:$0x1]
    %v203 = vlaneseq
    %v204 = vshrl.u32 %v203, 7
    %v205 = vsub.s32 0, %v204
    %v206 = vrot.slane %v201, %v205
    %v224 = vunpack.c.l.b16 %v185
    %v225 = vunpack.c.l.b16 %v186
    %v226 = vunpack.c.l.b16 %v187
    %v227 = vunpack.c.l.b16 %v188
    %v228 = vunpack.c.l.b16 %v189
    %v229 = vunpack.c.l.b16 %v190
    %v230 = vunpack.c.l.b16 %v191
    %v231 = vunpack.c.l.b16 %v192
    %v232 = vunpack.c.l.b16 %v193
    %v233 = vunpack.c.l.b16 %v194
    %v234 = vunpack.c.l.b16 %v195
    %v235 = vunpack.c.l.b16 %v196
    %v236 = vunpack.c.l.b16 %v197
    %v237 = vunpack.c.l.b16 %v198
    %v238 = vunpack.c.l.b16 %v199
    %v239 = vunpack.c.l.b16 %v200
    %v240 = vpack.c.b16 %v225, %v224
    %v241 = vpack.c.b16 %v227, %v226
    %v242 = vpack.c.b16 %v229, %v228
    %v243 = vpack.c.b16 %v231, %v230
    %v244 = vpack.c.b16 %v233, %v232
    %v245 = vpack.c.b16 %v235, %v234
    %v246 = vpack.c.b16 %v237, %v236
    %v247 = vpack.c.b16 %v239, %v238
    %256 = vmatprep.subr.bf16.mxu0 0
    %257 = vmatpush1.bf16.msra.mxu0 %v240
    %258 = vmatprep.subr.bf16.mxu0 0
    %259 = vmatpush1.bf16.msra.mxu0 %v241
    %260 = vmatprep.subr.bf16.mxu0 0
    %261 = vmatpush1.bf16.msra.mxu0 %v242
    %262 = vmatprep.subr.bf16.mxu0 0
    %263 = vmatpush1.bf16.msra.mxu0 %v243
    %264 = vmatprep.subr.bf16.mxu0 0
    %265 = vmatpush1.bf16.msra.mxu0 %v244
    %266 = vmatprep.subr.bf16.mxu0 0
    %267 = vmatpush1.bf16.msra.mxu0 %v245
    %268 = vmatprep.subr.bf16.mxu0 0
    %269 = vmatpush1.bf16.msra.mxu0 %v246
    %270 = vmatprep.subr.bf16.mxu0 0
    %271 = vmatpush1.bf16.msra.mxu0 %v247
    %272 = vmatprep.subr.bf16.mxu0 0
    %273 = vmatpush1.bf16.msra.mxu0 0
    %274 = vmatprep.subr.bf16.mxu0 0
    %275 = vmatpush1.bf16.msra.mxu0 0
    %276 = vmatprep.subr.bf16.mxu0 0
    %277 = vmatpush1.bf16.msra.mxu0 0
    %278 = vmatprep.subr.bf16.mxu0 0
    %279 = vmatpush1.bf16.msra.mxu0 0
    %280 = vmatprep.subr.bf16.mxu0 0
    %281 = vmatpush1.bf16.msra.mxu0 0
    %282 = vmatprep.subr.bf16.mxu0 0
    %283 = vmatpush1.bf16.msra.mxu0 0
    %284 = vmatprep.subr.bf16.mxu0 0
    %285 = vmatpush1.bf16.msra.mxu0 0
    %286 = vmatprep.subr.bf16.mxu0 0
    %287 = vmatpush1.bf16.msra.mxu0 0
    %288 = vmatprep.mubr.bf16.mxu0 0
    %289 = vmatmul.mubr.bf16.gmra.mrb[0].mxu0 %v184
    %v290 = vpop.f32.mrb[0].mxu0
    %v291 = vadd.f32 %v206, %v290
    %v292 = vpop.f32.mrb[0].mxu0
    %v293 = vpop.f32.mrb[0].mxu0
    %v294 = vpop.f32.mrb[0].mxu0
    %295 = vdwg.mxu0
    %296 = vst [vmem:[#allocation7] sm:$0xff] %v291
    // Predicated region
    $region38: #{tpu_custom_call.1} parent=1 // pred_check
      _
    $region39: #{tpu_custom_call.1} parent=1 // pred_check_branch
      %298 = sbr.rel (0) target = $region41
    $region40: #{tpu_custom_call.1} parent=1 // pred_region
      %s300 = ssub.s32 128, 128
      %301 = vsyncadd [#allocation4], %s300
      %s303 = sshll.u32 [#allocation7], 4
      %s304 = int_to_ptr.vmem [resolvable:$true] %s303
      %306 = dma.vmem_to_hbm [thread:$0]  %s304, 128, %s7, [#allocation4]
    $region41: #{tpu_custom_call.1} parent=1 // pred_fallthru
      _
    // Predicated region
    $region42: #{tpu_custom_call.1} parent=1 // pred_check
      _
    $region43: #{tpu_custom_call.1} parent=1 // pred_check_branch
      %308 = sbr.rel (0) target = $region45
    $region44: #{tpu_custom_call.1} parent=1 // pred_region
      %309 = dma.done [#allocation4], 128
    $region45: #{tpu_custom_call.1} parent=1 // pred_fallthru
      _
    %310 = vsyncpa [#allocation3], 1
    %311 = vsyncpa [#allocation6], 1
    %312 = vsyncpa [#allocation4], 1

</llo_original>
